<compile_context>
chip_gen: v7x
topology: tpu7x:2x2x1
jax: 0.10.0
libtpu: 0.0.40
codegen_flags: <defaults>
</compile_context>

<pallas_src>
import functools

import numpy as np

import jax
import jax.numpy as jnp
from jax import lax
from jax.experimental import pallas as pl
from jax.experimental.pallas import tpu as pltpu


INF_BITS = 0x7F800000        # bit pattern of +inf  (sentinel for ignored pixels)
HI_BITS = 0x40000000         # bit pattern of 2.0f  (> any softmax probability)

_N_BISECT_FAST = 32          # in-VMEM scalar bisection levels (31 suffice)
_N_BISECT_TILED = 17         # 3-probe quartile passes (16 suffice, +1 margin)
_N_PASS_TILED = 1 + _N_BISECT_TILED   # pass 0 counts the valid pixels

_CE_BLOCK_BYTES = 3 << 20    # logit-block budget for the CE kernel
_OHEM_BLOCK_BYTES = 1 << 20  # prob_bits block budget for the tiled OHEM stage
_FAST_PATH_MAX_BYTES = 8 << 20   # prob_bits + loss resident budget (all gens)
_VMEM_LIMIT = 32 << 20


def _float_bits(x):
    """int32 bit pattern of a python float, as a python int."""
    return int(np.asarray(x, np.float32).view(np.int32))


def _fast_path_max_bytes():
    """Conservative per-chip budget for keeping prob_bits + loss VMEM-resident."""
    try:
        cap = int(pltpu.get_tpu_info().vmem_capacity_bytes)
    except Exception:                       # interpret mode / older jax
        cap = 64 << 20                      # assume the smallest (v7x per-core)
    return max(min(cap // 4, _FAST_PATH_MAX_BYTES), 1 << 20)


def _largest_row_tile(rows, row_bytes, max_block_bytes):
    """Largest multiple-of-8 divisor of `rows` whose block fits the budget."""
    assert rows % 8 == 0, rows
    best = 8
    for cand in range(8, rows + 1, 8):
        if rows % cand == 0 and cand * row_bytes <= max_block_bytes:
            best = cand
    return best


# --------------------------------------------------------------------------
# Kernel 1: per-pixel softmax prob of target class (as int32 bits) + CE loss.
# --------------------------------------------------------------------------
def _make_ce_kernel(ignore_index, has_weight):
    def kernel(pred_ref, tgt_ref, *refs):
        if has_weight:
            w_ref, prob_ref, loss_ref = refs
        else:
            prob_ref, loss_ref = refs

        x = pred_ref[0].astype(jnp.float32)             # (C, TH, W)
        tgt = tgt_ref[0]                                # (TH, W) int32
        valid = tgt != ignore_index
        tgt_eff = jnp.where(valid, tgt, 0)              # tmp_target[ignore] = 0

        # class axis (0) is non-minor -> pure VPU elementwise reductions
        cls = lax.broadcasted_iota(jnp.int32, x.shape, 0)
        hit = cls == tgt_eff[None]                      # one-hot mask (C,TH,W)

        m = jnp.max(x, axis=0)                          # (TH, W)
        sum_ex = jnp.sum(jnp.exp(x - m[None]), axis=0)  # (TH, W)
        lse = m + jnp.log(sum_ex)
        logit_t = jnp.sum(jnp.where(hit, x, 0.0), axis=0)

        ce = lse - logit_t                              # unweighted CE
        prob_t = jnp.exp(logit_t - lse)                 # target softmax prob (EUP)
        if has_weight:
            w_t = jnp.sum(jnp.where(hit, w_ref[...], 0.0), axis=0)
            ce = ce * w_t
        loss_ref[0] = jnp.where(valid, ce, 0.0)

        # order-preserving int32 view of prob (prob >= 0); ignored -> +inf bits
        pb = pltpu.bitcast(prob_t, jnp.int32)
        prob_ref[0] = jnp.where(valid, pb, jnp.int32(INF_BITS))

    return kernel


# --------------------------------------------------------------------------
# Kernel 2 (fast path): prob_bits + loss fully VMEM resident.  num_valid, the
# exact bit-space bisection and the selected mean in ONE HBM read of each.
# --------------------------------------------------------------------------
def _ohem_fast_kernel(prob_ref, loss_ref, out_ref, *, batch_kept, thresh_bits):
    bits = prob_ref[...]                                # (R, W) int32
    num_valid = jnp.sum((bits <= HI_BITS).astype(jnp.int32), keepdims=True)
    k1 = jnp.minimum(jnp.full((1, 1), batch_kept, jnp.int32), num_valid - 1) + 1

    def level(_, carry):
        lo, hi = carry
        mid = jnp.right_shift(lo + hi, 1)
        cnt = jnp.sum((bits <= mid).astype(jnp.int32), keepdims=True)
        ge = cnt >= k1
        return jnp.where(ge, lo, mid), jnp.where(ge, mid, hi)

    lo0 = jnp.full((1, 1), -1, jnp.int32)               # cnt(lo) <  k+1
    hi0 = jnp.full((1, 1), HI_BITS, jnp.int32)          # cnt(hi) >= k+1
    _, hi = lax.fori_loop(0, _N_BISECT_FAST, level, (lo0, hi0))

    thr = jnp.maximum(hi, jnp.full((1, 1), thresh_bits, jnp.int32))
    sel = bits < thr                                    # strict <, exact in bit space
    s = jnp.sum(jnp.where(sel, loss_ref[...], 0.0), keepdims=True)
    c = jnp.sum(sel.astype(jnp.int32), keepdims=True)
    out_ref[...] = s / c.astype(jnp.float32)            # NaN if nothing selected


# --------------------------------------------------------------------------
# Kernel 2a (tiled fallback): OHEM threshold via exact multi-probe bit-space
# search (3 quartile probes / pass -> ~4x interval shrink, 18 sweeps total).
# --------------------------------------------------------------------------
def _ohem_threshold_kernel(prob_ref, thr_ref,
                           lo_ref, hi_ref, k1_ref, c1_ref, c2_ref, c3_ref,
                           *, batch_kept, thresh_bits):
    p = pl.program_id(0)                  # pass index
    t = pl.program_id(1)                  # row tile
    nt = pl.num_programs(1)
    first_tile = t == 0
    last_tile = t == nt - 1

    @pl.when(jnp.logical_and(p == 0, first_tile))
    def _():
        lo_ref[...] = jnp.full((1, 1), -1, jnp.int32)        # cnt(lo) <  k+1
        hi_ref[...] = jnp.full((1, 1), HI_BITS, jnp.int32)   # cnt(hi) >= k+1
        k1_ref[...] = jnp.full((1, 1), 1, jnp.int32)         # placeholder

    @pl.when(first_tile)
    def _():
        c1_ref[...] = jnp.zeros((1, 1), jnp.int32)
        c2_ref[...] = jnp.zeros((1, 1), jnp.int32)
        c3_ref[...] = jnp.zeros((1, 1), jnp.int32)

    lo = lo_ref[...]
    hi = hi_ref[...]
    d = hi - lo
    # pass 0 probes everything at hi (-> num_valid); later passes probe three
    # quartile points of (lo, hi] (no 2*d / 3*d products: stays int32-safe).
    q1 = lo + d // 4
    q2 = lo + jnp.right_shift(d, 1)
    q3 = q2 + jnp.right_shift(hi - q2, 1)
    is0 = (jnp.zeros((1, 1), jnp.int32) + p) == 0
    p1 = jnp.where(is0, hi, q1)
    p2 = jnp.where(is0, hi, q2)
    p3 = jnp.where(is0, hi, q3)

    bits = prob_ref[...]                                     # (TR, W) int32
    c1_ref[...] += jnp.sum((bits <= p1).astype(jnp.int32), keepdims=True)
    c2_ref[...] += jnp.sum((bits <= p2).astype(jnp.int32), keepdims=True)
    c3_ref[...] += jnp.sum((bits <= p3).astype(jnp.int32), keepdims=True)

    @pl.when(last_tile)
    def _():
        c1 = c1_ref[...]
        c2 = c2_ref[...]
        c3 = c3_ref[...]

        @pl.when(p == 0)
        def _():
            num_valid = c1                                   # all probes == hi
            k = jnp.minimum(jnp.full((1, 1), batch_kept, jnp.int32),
                            num_valid - 1)
            k1_ref[...] = k + 1

        @pl.when(p > 0)
        def _():
            k1 = k1_ref[...]
            ge1 = c1 >= k1
            ge2 = c2 >= k1
            ge3 = c3 >= k1
            # smallest probe whose count reaches k+1 becomes the new hi; its
            # predecessor (or lo) the new lo -> interval shrinks ~4x per pass.
            hi_ref[...] = jnp.where(ge1, p1,
                                    jnp.where(ge2, p2, jnp.where(ge3, p3, hi)))
            lo_ref[...] = jnp.where(ge1, lo,
                                    jnp.where(ge2, p1, jnp.where(ge3, p2, p3)))

        @pl.when(p == pl.num_programs(0) - 1)
        def _():
            # hi == bits(sort_prob[k]) exactly; max in bit space == max in floats
            thr_ref[...] = jnp.maximum(
                hi_ref[...], jnp.full((1, 1), thresh_bits, jnp.int32))


# --------------------------------------------------------------------------
# Kernel 2b (tiled fallback): masked mean of losses with prob < threshold.
# --------------------------------------------------------------------------
def _ohem_reduce_kernel(thr_ref, prob_ref, loss_ref, out_ref, sum_ref, cnt_ref):
    t = pl.program_id(0)
    nt = pl.num_programs(0)

    @pl.when(t == 0)
    def _():
        sum_ref[...] = jnp.zeros((1, 1), jnp.float32)
        cnt_ref[...] = jnp.zeros((1, 1), jnp.int32)

    bits = prob_ref[...]                  # (TR, W) int32 (ignored = +inf bits)
    sel = bits < thr_ref[...]             # strict <, exact bit-space comparison
    sum_ref[...] += jnp.sum(jnp.where(sel, loss_ref[...], 0.0), keepdims=True)
    cnt_ref[...] += jnp.sum(sel.astype(jnp.int32), keepdims=True)

    @pl.when(t == nt - 1)
    def _():
        # NaN when nothing selected, matching torch .mean() of an empty tensor
        out_ref[...] = sum_ref[...] / cnt_ref[...].astype(jnp.float32)


# --------------------------------------------------------------------------
# Wrapper
# --------------------------------------------------------------------------
def ohem_cross_entropy_2d(predict, target, *, ignore_index=255, thresh=0.7,
                          min_kept=100000, weight=None, force_tiled=False,
                          ce_block_bytes=_CE_BLOCK_BYTES,
                          ohem_block_bytes=_OHEM_BLOCK_BYTES):
    """predict: (n, c, h, w) float; target: (n, h, w) int. Returns scalar loss."""
    n, c, h, w = predict.shape
    target = target.astype(jnp.int32)

    # Pad H to a multiple of 8 with ignored rows so 8-row-multiple tiling is
    # always legal (padded pixels vanish from every later reduction).
    h_pad = -(-h // 8) * 8
    if h_pad != h:
        predict = jnp.pad(predict, ((0, 0), (0, 0), (0, h_pad - h), (0, 0)))
        target = jnp.pad(target, ((0, 0), (0, h_pad - h), (0, 0)),
                         constant_values=ignore_index)

    has_weight = weight is not None
    th = _largest_row_tile(h_pad, c * w * 4, ce_block_bytes)
    n_row_tiles = h_pad // th

    in_specs = [
        pl.BlockSpec((1, c, th, w), lambda b, t: (b, 0, t, 0)),
        pl.BlockSpec((1, th, w), lambda b, t: (b, t, 0)),
    ]
    args = [predict, target]
    if has_weight:
        in_specs.append(pl.BlockSpec((c, 1, 1), lambda b, t: (0, 0, 0)))
        args.append(jnp.asarray(weight, jnp.float32).reshape(c, 1, 1))

    prob_bits, loss = pl.pallas_call(
        _make_ce_kernel(ignore_index, has_weight),
        grid=(n, n_row_tiles),
        in_specs=in_specs,
        out_specs=(
            pl.BlockSpec((1, th, w), lambda b, t: (b, t, 0)),
            pl.BlockSpec((1, th, w), lambda b, t: (b, t, 0)),
        ),
        out_shape=(
            jax.ShapeDtypeStruct((n, h_pad, w), jnp.int32),
            jax.ShapeDtypeStruct((n, h_pad, w), jnp.float32),
        ),
        compiler_params=pltpu.CompilerParams(
            dimension_semantics=("parallel", "parallel"),
            vmem_limit_bytes=_VMEM_LIMIT),
    )(*args)

    # ---- Stage 2: OHEM threshold + selected mean over the flattened maps ----
    rows = n * h_pad
    prob2d = prob_bits.reshape(rows, w)     # free reshape (contiguous)
    loss2d = loss.reshape(rows, w)

    batch_kept = int(min_kept) * int(n)
    thresh_bits = _float_bits(thresh)

    total_bytes = 2 * rows * w * 4
    if not force_tiled and total_bytes <= _fast_path_max_bytes():
        mean = pl.pallas_call(
            functools.partial(_ohem_fast_kernel,
                              batch_kept=batch_kept, thresh_bits=thresh_bits),
            out_shape=jax.ShapeDtypeStruct((1, 1), jnp.float32),
            compiler_params=pltpu.CompilerParams(vmem_limit_bytes=_VMEM_LIMIT),
        )(prob2d, loss2d)
        return mean[0, 0]

    # Tiled fallback: tiles for the OHEM stage are chosen independently of the
    # CE-kernel tiling (fat, lane-dense (TR, W) blocks).
    tr = _largest_row_tile(rows, w * 4, ohem_block_bytes)
    n_tiles = rows // tr

    thr_bits = pl.pallas_call(
        functools.partial(_ohem_threshold_kernel,
                          batch_kept=batch_kept, thresh_bits=thresh_bits),
        grid=(_N_PASS_TILED, n_tiles),
        in_specs=[pl.BlockSpec((tr, w), lambda p, t: (t, 0))],
        out_specs=pl.BlockSpec((1, 1), lambda p, t: (0, 0)),
        out_shape=jax.ShapeDtypeStruct((1, 1), jnp.int32),
        scratch_shapes=[pltpu.VMEM((1, 1), jnp.int32)] * 6,  # lo,hi,k+1,c1,c2,c3
        compiler_params=pltpu.CompilerParams(
            dimension_semantics=("arbitrary", "arbitrary")),
    )(prob2d)

    mean = pl.pallas_call(
        _ohem_reduce_kernel,
        grid=(n_tiles,),
        in_specs=[
            pl.BlockSpec((1, 1), lambda t: (0, 0)),
            pl.BlockSpec((tr, w), lambda t: (t, 0)),
            pl.BlockSpec((tr, w), lambda t: (t, 0)),
        ],
        out_specs=pl.BlockSpec((1, 1), lambda t: (0, 0)),
        out_shape=jax.ShapeDtypeStruct((1, 1), jnp.float32),
        scratch_shapes=[pltpu.VMEM((1, 1), jnp.float32),
                        pltpu.VMEM((1, 1), jnp.int32)],
        compiler_params=pltpu.CompilerParams(
            dimension_semantics=("arbitrary",)),
    )(thr_bits, prob2d, loss2d)

    return mean[0, 0]


# --------------------------------------------------------------------------
# Pure-JAX reference (mirrors the PyTorch forward) for verification.
# --------------------------------------------------------------------------
def _reference(predict, target, *, ignore_index, thresh, min_kept, weight=None):
    n, c, h, w = predict.shape
    batch_kept = min_kept * n
    logits = jnp.transpose(predict, (0, 2, 3, 1)).reshape(-1, c).astype(jnp.float32)
    tgt = target.reshape(-1).astype(jnp.int32)
    valid = tgt != ignore_index
    tgt_eff = jnp.where(valid, tgt, 0)
    m = jnp.max(logits, axis=-1)
    lse = m + jnp.log(jnp.sum(jnp.exp(logits - m[:, None]), axis=-1))
    logit_t = jnp.take_along_axis(logits, tgt_eff[:, None], axis=1)[:, 0]
    prob = jnp.exp(logit_t - lse)
    wv = jnp.ones((c,), jnp.float32) if weight is None else jnp.asarray(weight, jnp.float32)
    loss = jnp.where(valid, wv[tgt_eff] * (lse - logit_t), 0.0)
    numv = jnp.sum(valid)
    sp = jnp.sort(jnp.where(valid, prob, jnp.inf))
    k = jnp.minimum(batch_kept, numv - 1)
    min_thr = jnp.where(numv > 0, sp[k], 0.0)
    threshold = jnp.maximum(min_thr, jnp.float32(thresh))
    sel = valid & (prob < threshold)
    return jnp.sum(jnp.where(sel, loss, 0.0)) / jnp.sum(sel)


if __name__ == "__main__":
    key = jax.random.PRNGKey(0)
    ignore_index, thresh = 255, 0.7

    def make_inputs(sub, n, c, h, w):
        k1, k2, k3 = jax.random.split(sub, 3)
        predict = jax.random.normal(k1, (n, c, h, w), jnp.float32) * 2.0
        target = jax.random.randint(k2, (n, h, w), 0, c, dtype=jnp.int32)
        ignore_mask = jax.random.bernoulli(k3, 0.1, (n, h, w))
        target = jnp.where(ignore_mask, jnp.int32(ignore_index), target)
        return predict, target

    # Config A: thresh-dominant threshold, no class weights.
    pa, ta = make_inputs(jax.random.fold_in(key, 0), 2, 8, 16, 16)
    mka = 64
    wa = None
    # Config B: weighted, H not a multiple of 8, min_kept larger than the
    # number of valid pixels (order-statistic-dominant threshold).
    nb, cb, hb, wb = 2, 19, 20, 24
    pb, tb = make_inputs(jax.random.fold_in(key, 1), nb, cb, hb, wb)
    mkb = 100000
    wvec = jnp.linspace(0.5, 1.5, cb, dtype=jnp.float32)

    cases = [
        ("A_fast", pa, ta, mka, wa, False, _CE_BLOCK_BYTES, _OHEM_BLOCK_BYTES),
        ("A_tiled", pa, ta, mka, wa, True, 8 * 8 * 16 * 4, 8 * 16 * 4),
        ("B_fast", pb, tb, mkb, wvec, False, _CE_BLOCK_BYTES, _OHEM_BLOCK_BYTES),
        ("B_tiled", pb, tb, mkb, wvec, True, 8 * cb * wb * 4, 8 * wb * 4),
    ]

    for name, pred, tgt, mk, wt, forced, ceb, ohb in cases:
        out = ohem_cross_entropy_2d(
            pred, tgt, ignore_index=ignore_index, thresh=thresh, min_kept=mk,
            weight=wt, force_tiled=forced,
            ce_block_bytes=ceb, ohem_block_bytes=ohb)
        out = jax.block_until_ready(out)
        ref = _reference(pred, tgt, ignore_index=ignore_index, thresh=thresh,
                         min_kept=mk, weight=wt)
        assert bool(jnp.isfinite(out)), f"{name}: non-finite loss {out}"
        assert jnp.allclose(out, ref, rtol=1e-5, atol=1e-5), (name, out, ref)

    print("KERNEL_OK")
</pallas_src>

<mosaic_0001>
module attributes {stable_mosaic.version = 11 : i64} {
  func.func @kernel(%arg0: i32, %arg1: i32, %arg2: memref<1x8x16x16xf32, #tpu.memory_space<vmem>>, %arg3: memref<1x16x16xi32, #tpu.memory_space<vmem>>, %arg4: memref<1x16x16xi32, #tpu.memory_space<vmem>>, %arg5: memref<1x16x16xf32, #tpu.memory_space<vmem>>) attributes {dimension_semantics = [#tpu.dimension_semantics<parallel>, #tpu.dimension_semantics<parallel>], iteration_bounds = array<i64: 2, 1>, scalar_prefetch = 0 : i64, scratch_operands = 0 : i64, tpu.core_type = #tpu.core_type<tc>, window_params = [{transform_indices = @transform_0, window_bounds = array<i64: 1, 8, 16, 16>}, {transform_indices = @transform_1, window_bounds = array<i64: 1, 16, 16>}, {transform_indices = @transform_2, window_bounds = array<i64: 1, 16, 16>}, {transform_indices = @transform_3, window_bounds = array<i64: 1, 16, 16>}]} {
    %c0 = arith.constant 0 : index
    %c0_0 = arith.constant 0 : index
    %c0_1 = arith.constant 0 : index
    %c0_2 = arith.constant 0 : index
    %0 = vector.load %arg2[%c0, %c0_0, %c0_1, %c0_2] : memref<1x8x16x16xf32, #tpu.memory_space<vmem>>, vector<1x8x16x16xf32>
    %1 = vector.shape_cast %0 : vector<1x8x16x16xf32> to vector<8x16x16xf32>
    %c0_3 = arith.constant 0 : index
    %c0_4 = arith.constant 0 : index
    %c0_5 = arith.constant 0 : index
    %2 = vector.load %arg3[%c0_3, %c0_4, %c0_5] : memref<1x16x16xi32, #tpu.memory_space<vmem>>, vector<1x16x16xi32>
    %3 = vector.shape_cast %2 : vector<1x16x16xi32> to vector<16x16xi32>
    %c255_i32 = arith.constant 255 : i32
    %4 = vector.broadcast %c255_i32 : i32 to vector<16x16xi32>
    %5 = arith.cmpi ne, %3, %4 : vector<16x16xi32>
    %c0_i32 = arith.constant 0 : i32
    %6 = vector.broadcast %c0_i32 : i32 to vector<16x16xi32>
    %7 = arith.select %5, %3, %6 : vector<16x16xi1>, vector<16x16xi32>
    %8 = tpu.iota {dimensions = array<i32: 0>} : vector<8x16x16xi32>
    %9 = vector.shape_cast %7 : vector<16x16xi32> to vector<1x16x16xi32>
    %10 = vector.broadcast %9 : vector<1x16x16xi32> to vector<8x16x16xi32>
    %11 = arith.cmpi eq, %8, %10 : vector<8x16x16xi32>
    %cst = arith.constant dense<0xFF800000> : vector<16x16xf32>
    %12 = vector.multi_reduction <maximumf>, %1, %cst [0] : vector<8x16x16xf32> to vector<16x16xf32>
    %13 = vector.shape_cast %12 : vector<16x16xf32> to vector<1x16x16xf32>
    %14 = vector.broadcast %13 : vector<1x16x16xf32> to vector<8x16x16xf32>
    %15 = arith.subf %1, %14 : vector<8x16x16xf32>
    %16 = math.exp %15 : vector<8x16x16xf32>
    %cst_6 = arith.constant dense<0.000000e+00> : vector<16x16xf32>
    %17 = vector.multi_reduction <add>, %16, %cst_6 [0] : vector<8x16x16xf32> to vector<16x16xf32>
    %18 = math.log %17 : vector<16x16xf32>
    %19 = arith.addf %12, %18 : vector<16x16xf32>
    %cst_7 = arith.constant 0.000000e+00 : f32
    %20 = vector.broadcast %cst_7 : f32 to vector<8x16x16xf32>
    %21 = arith.select %11, %1, %20 : vector<8x16x16xi1>, vector<8x16x16xf32>
    %cst_8 = arith.constant dense<0.000000e+00> : vector<16x16xf32>
    %22 = vector.multi_reduction <add>, %21, %cst_8 [0] : vector<8x16x16xf32> to vector<16x16xf32>
    %23 = arith.subf %19, %22 : vector<16x16xf32>
    %24 = arith.subf %22, %19 : vector<16x16xf32>
    %25 = math.exp %24 : vector<16x16xf32>
    %cst_9 = arith.constant 0.000000e+00 : f32
    %26 = vector.broadcast %cst_9 : f32 to vector<16x16xf32>
    %27 = arith.select %5, %23, %26 : vector<16x16xi1>, vector<16x16xf32>
    %c0_10 = arith.constant 0 : index
    %c0_11 = arith.constant 0 : index
    %c0_12 = arith.constant 0 : index
    %28 = vector.load %arg5[%c0_10, %c0_11, %c0_12] : memref<1x16x16xf32, #tpu.memory_space<vmem>>, vector<1x16x16xf32>
    %29 = vector.shape_cast %28 : vector<1x16x16xf32> to vector<16x16xf32>
    %30 = vector.shape_cast %27 : vector<16x16xf32> to vector<1x16x16xf32>
    tpu.vector_store %arg5[%c0_10, %c0_11, %c0_12], %30 {strides = array<i32>} : memref<1x16x16xf32, #tpu.memory_space<vmem>>, vector<1x16x16xf32>,
    %31 = tpu.bitcast %25 : vector<16x16xf32> -> vector<16x16xi32>
    %c2139095040_i32 = arith.constant 2139095040 : i32
    %32 = vector.broadcast %c2139095040_i32 : i32 to vector<16x16xi32>
    %33 = arith.select %5, %31, %32 : vector<16x16xi1>, vector<16x16xi32>
    %c0_13 = arith.constant 0 : index
    %c0_14 = arith.constant 0 : index
    %c0_15 = arith.constant 0 : index
    %34 = vector.load %arg4[%c0_13, %c0_14, %c0_15] : memref<1x16x16xi32, #tpu.memory_space<vmem>>, vector<1x16x16xi32>
    %35 = vector.shape_cast %34 : vector<1x16x16xi32> to vector<16x16xi32>
    %36 = vector.shape_cast %33 : vector<16x16xi32> to vector<1x16x16xi32>
    tpu.vector_store %arg4[%c0_13, %c0_14, %c0_15], %36 {strides = array<i32>} : memref<1x16x16xi32, #tpu.memory_space<vmem>>, vector<1x16x16xi32>,
    return
  }
  func.func @transform_0(%arg0: i32, %arg1: i32) -> (i32, i32, i32, i32) {
    %c0_i32 = arith.constant 0 : i32
    %c0_i32_0 = arith.constant 0 : i32
    %c0_i32_1 = arith.constant 0 : i32
    return %arg0, %c0_i32, %arg1, %c0_i32_0 : i32, i32, i32, i32
  }
  func.func @transform_1(%arg0: i32, %arg1: i32) -> (i32, i32, i32) {
    %c0_i32 = arith.constant 0 : i32
    %c0_i32_0 = arith.constant 0 : i32
    return %arg0, %arg1, %c0_i32 : i32, i32, i32
  }
  func.func @transform_2(%arg0: i32, %arg1: i32) -> (i32, i32, i32) {
    %c0_i32 = arith.constant 0 : i32
    %c0_i32_0 = arith.constant 0 : i32
    return %arg0, %arg1, %c0_i32 : i32, i32, i32
  }
  func.func @transform_3(%arg0: i32, %arg1: i32) -> (i32, i32, i32) {
    %c0_i32 = arith.constant 0 : i32
    %c0_i32_0 = arith.constant 0 : i32
    return %arg0, %arg1, %c0_i32 : i32, i32, i32
  }
}

</mosaic_0001>

<llo_original>
// kernel: tpu_custom_call.1
$region0: #{tpu_custom_call.1}
  #allocation0 [shape = 'u32[]', space=smem, size = 0x4, offset = 0x4, fixed_abs, tag = 'smem constant byte address 0x4 - core index']
  #allocation1 [shape = 'u32[144,128]{1,0:T(1,128)}', space=vmem, size = 0x12000, scoped, tag = 'internal scratch']
  %s0 = inlined_call_operand.hbm [shape: f32[2,8,16,16], index: 0, kind: input, shape index: {}]
  %s1 = inlined_call_operand.hbm [shape: s32[2,16,16], index: 1, kind: input, shape index: {}]
  %s2 = inlined_call_operand.hbm [shape: s32[2,16,16], index: 2, kind: output, shape index: {0}]
  %s3 = inlined_call_operand.hbm [shape: f32[2,16,16], index: 3, kind: output, shape index: {1}]
  %4 = xla_tuple %s2, %s3
  %s5 = sld [smem:[#allocation0]]
  $region57: #{tpu_custom_call.1} parent=0
    _
  %s7 = ssub.s32 1, %s5
  %s8 = scalar_select 0, %s7, %s5
  $region1: #{tpu_custom_call.1} parent=0
    #allocation2 [shape = 'u8[131072]{0}', space=vmem, size = 0x20000, scoped, tag = 'input window, operand 0']
    #allocation3 [shape = 's32[2]{0}', space=sflag, size = 0x8, scoped, tag = 'scoped memory for tpu_custom_call.1']
    #allocation4 [shape = 's32[2]{0}', space=sflag, size = 0x8, scoped, tag = 'scoped memory for tpu_custom_call.1']
    #allocation5 [shape = 'u8[16384]{0}', space=vmem, size = 0x4000, scoped, tag = 'input window, operand 1']
    #allocation6 [shape = 's32[2]{0}', space=sflag, size = 0x8, scoped, tag = 'scoped memory for tpu_custom_call.1']
    #allocation7 [shape = 'u8[16384]{0}', space=vmem, size = 0x4000, scoped, tag = 'output window, operand 0']
    #allocation8 [shape = 'u8[16384]{0}', space=vmem, size = 0x4000, scoped, tag = 'output window, operand 1']
    #allocation9 [shape = 's32[2]{0}', space=sflag, size = 0x8, scoped, tag = 'scoped memory for tpu_custom_call.1']
    %9 = vsyncpa [#allocation3], 0
    %s10 = scalar_lea.sflag [#allocation3], 1
    %11 = vsyncpa %s10, 0
    %12 = vsyncpa [#allocation6], 0
    %s13 = scalar_lea.sflag [#allocation6], 1
    %14 = vsyncpa %s13, 0
    %15 = vsyncpa [#allocation4], 0
    %s16 = scalar_lea.sflag [#allocation4], 1
    %17 = vsyncpa %s16, 0
    %18 = vsyncpa [#allocation9], 0
    %s19 = scalar_lea.sflag [#allocation9], 1
    %20 = vsyncpa %s19, 0
    loop: start=0, step=1, limit=4
    $region2: #{tpu_custom_call.1} parent=1 // loop_pre_header
      _
    $region3: #{tpu_custom_call.1} parent=1 // loop_header
      %s22 = sphi 0, %s26
      %p23 = scmp.ge.s32.totalorder %s22, 4
      %s29 = sphi 0, %s41
      %s30 = sphi 0, %s37
      %s31 = sphi 0, %s29
      %s32 = sphi 0, %s30
      %s33 = sphi 0, %s31
      %s34 = sphi 0, %s32
      %s46 = sphi 0, %s48
      %s49 = sphi 0, %s46
      %s50 = sphi 0, %s49
      %s66 = sphi 0, %s50
      %s74 = sphi 0, %s76
      %s77 = sphi 0, %s74
      %s78 = sphi 0, %s77
      %s94 = sphi 0, %s78
      %s102 = sphi 0, %s104
      %s105 = sphi 0, %s102
      %s106 = sphi 0, %s105
      %s122 = sphi 0, %s106
      %s130 = sphi 0, %s132
      %s133 = sphi 0, %s130
      %s134 = sphi 0, %s133
      %s150 = sphi 0, %s134
    $region4: #{tpu_custom_call.1} parent=1 // loop_header_branch
      %25 = sbr.rel (%p23) target = $region8
    $region5: #{tpu_custom_call.1} parent=1 // loop_body
      %s27 = ssub.s32 %s22, 1
      %s28 = ssub.s32 %s22, 2
      %s35 = sadd.s32 1, %s30
      %p36 = scmp.ge.s32.totalorder %s35, 1
      %s37 = scalar_select %p36, 0, %s35
      %s38 = sadd.s32 1, %s29
      %s39 = scalar_select %p36, %s38, %s29
      %p40 = scmp.ge.s32.totalorder %s39, 2
      %s41 = scalar_select %p40, 0, %s39
      %s42 = ssub.s32 %s29, %s41
      %s43 = ssub.s32 %s30, %s37
      %s44 = sor.u32 %s42, %s43
      %p45 = scmp.eq.s32.totalorder %s44, 0
      %s47 = sadd.s32 %s46, 1
      %s48 = scalar_select %p45, %s46, %s47
      %p51 = pneg %p45
      %p52 = scmp.eq.s32.totalorder %s22, 1
      %p53 = por %p51, %p52
      %p54 = scmp.ne.s32.totalorder %s46, %s49
      %p55 = scmp.eq.s32.totalorder %s22, 0
      %p56 = por %p54, %p55
      %p57 = scmp.ne.s32.totalorder %s46, %s49
      %p58 = scmp.eq.s32.totalorder %s27, 1
      %p59 = por %p57, %p58
      %p60 = scmp.ne.s32.totalorder %s49, %s50
      %p61 = scmp.eq.s32.totalorder %s27, 0
      %p62 = por %p60, %p61
      %p63 = scmp.ne.s32.totalorder %s49, %s50
      %p64 = scmp.eq.s32.totalorder %s28, 1
      %p65 = por %p63, %p64
      %p67 = scmp.ne.s32.totalorder %s50, %s66
      %p68 = scmp.eq.s32.totalorder %s28, 0
      %p69 = por %p67, %p68
      %s70 = ssub.s32 %s29, %s41
      %s71 = ssub.s32 %s30, %s37
      %s72 = sor.u32 %s70, %s71
      %p73 = scmp.eq.s32.totalorder %s72, 0
      %s75 = sadd.s32 %s74, 1
      %s76 = scalar_select %p73, %s74, %s75
      %p79 = pneg %p73
      %p80 = scmp.eq.s32.totalorder %s22, 1
      %p81 = por %p79, %p80
      %p82 = scmp.ne.s32.totalorder %s74, %s77
      %p83 = scmp.eq.s32.totalorder %s22, 0
      %p84 = por %p82, %p83
      %p85 = scmp.ne.s32.totalorder %s74, %s77
      %p86 = scmp.eq.s32.totalorder %s27, 1
      %p87 = por %p85, %p86
      %p88 = scmp.ne.s32.totalorder %s77, %s78
      %p89 = scmp.eq.s32.totalorder %s27, 0
      %p90 = por %p88, %p89
      %p91 = scmp.ne.s32.totalorder %s77, %s78
      %p92 = scmp.eq.s32.totalorder %s28, 1
      %p93 = por %p91, %p92
      %p95 = scmp.ne.s32.totalorder %s78, %s94
      %p96 = scmp.eq.s32.totalorder %s28, 0
      %p97 = por %p95, %p96
      %s98 = ssub.s32 %s29, %s41
      %s99 = ssub.s32 %s30, %s37
      %s100 = sor.u32 %s98, %s99
      %p101 = scmp.eq.s32.totalorder %s100, 0
      %s103 = sadd.s32 %s102, 1
      %s104 = scalar_select %p101, %s102, %s103
      %p107 = pneg %p101
      %p108 = scmp.eq.s32.totalorder %s22, 1
      %p109 = por %p107, %p108
      %p110 = scmp.ne.s32.totalorder %s102, %s105
      %p111 = scmp.eq.s32.totalorder %s22, 0
      %p112 = por %p110, %p111
      %p113 = scmp.ne.s32.totalorder %s102, %s105
      %p114 = scmp.eq.s32.totalorder %s27, 1
      %p115 = por %p113, %p114
      %p116 = scmp.ne.s32.totalorder %s105, %s106
      %p117 = scmp.eq.s32.totalorder %s27, 0
      %p118 = por %p116, %p117
      %p119 = scmp.ne.s32.totalorder %s105, %s106
      %p120 = scmp.eq.s32.totalorder %s28, 1
      %p121 = por %p119, %p120
      %p123 = scmp.ne.s32.totalorder %s106, %s122
      %p124 = scmp.eq.s32.totalorder %s28, 0
      %p125 = por %p123, %p124
      %s126 = ssub.s32 %s29, %s41
      %s127 = ssub.s32 %s30, %s37
      %s128 = sor.u32 %s126, %s127
      %p129 = scmp.eq.s32.totalorder %s128, 0
      %s131 = sadd.s32 %s130, 1
      %s132 = scalar_select %p129, %s130, %s131
      %p135 = pneg %p129
      %p136 = scmp.eq.s32.totalorder %s22, 1
      %p137 = por %p135, %p136
      %p138 = scmp.ne.s32.totalorder %s130, %s133
      %p139 = scmp.eq.s32.totalorder %s22, 0
      %p140 = por %p138, %p139
      %p141 = scmp.ne.s32.totalorder %s130, %s133
      %p142 = scmp.eq.s32.totalorder %s27, 1
      %p143 = por %p141, %p142
      %p144 = scmp.ne.s32.totalorder %s133, %s134
      %p145 = scmp.eq.s32.totalorder %s27, 0
      %p146 = por %p144, %p145
      %p147 = scmp.ne.s32.totalorder %s133, %s134
      %p148 = scmp.eq.s32.totalorder %s28, 1
      %p149 = por %p147, %p148
      %p151 = scmp.ne.s32.totalorder %s134, %s150
      %p152 = scmp.eq.s32.totalorder %s28, 0
      %p153 = por %p151, %p152
      %p154 = scmp.le.s32.totalorder 1, %s22
      %p155 = scmp.lt.s32.totalorder %s22, 3
      %p156 = pnand %p154, %p155
      %p157 = pneg %p156
      // Predicated region
      $region9: #{tpu_custom_call.1} parent=5 // pred_check
        _
      $region10: #{tpu_custom_call.1} parent=5 // pred_check_branch
        %159 = sbr.rel (%p156) target = $region12
      $region11: #{tpu_custom_call.1} parent=5 // pred_region
        %s160 = ssub.s32 %s22, 1
      $region12: #{tpu_custom_call.1} parent=5 // pred_fallthru
        _
      %p161 = scmp.lt.s32.totalorder %s22, 2
      // Predicated region
      $region13: #{tpu_custom_call.1} parent=5 // pred_check
        %p162 = pneg %p161
      $region14: #{tpu_custom_call.1} parent=5 // pred_check_branch
        %164 = sbr.rel (%p162) target = $region16
      $region15: #{tpu_custom_call.1} parent=5 // pred_region
        // Predicated region
        $region17: #{tpu_custom_call.1} parent=15 // pred_check
          %p165 = pneg %p56
        $region18: #{tpu_custom_call.1} parent=15 // pred_check_branch
          %167 = sbr.rel (%p165) target = $region20
        $region19: #{tpu_custom_call.1} parent=15 // pred_region
          %s168 = sand.u32 %s46, 1
          %s169 = scalar_lea.sflag [#allocation3], %s168
          %s170 = sand.u32 %s46, 1
          %s171 = smul.addr %s170, 128
          %s172 = scalar_lea.vmem [#allocation2], %s171
          %s173 = smul.u32 2, %s30
          %s175 = ssub.s32 2048, 2048
          %176 = vsyncadd %s169, %s175
          %s177 = smul.addr %s29, 16
          %s178 = sadd.s32 %s173, %s177
          %s179 = smul.addr %s178, 128
          %s180 = scalar_lea.hbm %s0, %s179
          %s181 = sshll.u32 %s172, 4
          %s182 = int_to_ptr.vmem [resolvable:$true] %s181
          %187 = dma.hbm_to_vmem [thread:$0]  %s180, 2048, %s182, %s169, 128, 128, 8
        $region20: #{tpu_custom_call.1} parent=15 // pred_fallthru
          _
        // Predicated region
        $region21: #{tpu_custom_call.1} parent=15 // pred_check
          %p188 = pneg %p84
        $region22: #{tpu_custom_call.1} parent=15 // pred_check_branch
          %190 = sbr.rel (%p188) target = $region24
        $region23: #{tpu_custom_call.1} parent=15 // pred_region
          %s191 = sand.u32 %s74, 1
          %s192 = scalar_lea.sflag [#allocation6], %s191
          %s193 = sand.u32 %s74, 1
          %s194 = smul.addr %s193, 16
          %s195 = scalar_lea.vmem [#allocation5], %s194
          %s196 = smul.u32 2, %s30
          %s198 = ssub.s32 256, 256
          %199 = vsyncadd %s192, %s198
          %s200 = smul.addr %s29, 2
          %s201 = sadd.s32 %s196, %s200
          %s202 = smul.addr %s201, 128
          %s203 = scalar_lea.hbm %s1, %s202
          %s204 = sshll.u32 %s195, 4
          %s205 = int_to_ptr.vmem [resolvable:$true] %s204
          %210 = dma.hbm_to_vmem [thread:$0]  %s203, 256, %s205, %s192, 128, 128, 8
        $region24: #{tpu_custom_call.1} parent=15 // pred_fallthru
          _
      $region16: #{tpu_custom_call.1} parent=5 // pred_fallthru
        _
      %p211 = scmp.le.s32.totalorder 1, %s22
      %p212 = scmp.lt.s32.totalorder %s22, 3
      %p213 = pnand %p211, %p212
      %p214 = pneg %p213
      // Predicated region
      $region25: #{tpu_custom_call.1} parent=5 // pred_check
        _
      $region26: #{tpu_custom_call.1} parent=5 // pred_check_branch
        %216 = sbr.rel (%p213) target = $region28
      $region27: #{tpu_custom_call.1} parent=5 // pred_region
        %s217 = ssub.s32 %s22, 1
        %s218 = sand.u32 %s49, 1
        %s219 = scalar_lea.sflag [#allocation3], %s218
        %s220 = sand.u32 %s49, 1
        %s221 = smul.addr %s220, 128
        %s222 = scalar_lea.vmem [#allocation2], %s221
        // Predicated region
        $region29: #{tpu_custom_call.1} parent=27 // pred_check
          %p223 = pneg %p62
        $region30: #{tpu_custom_call.1} parent=27 // pred_check_branch
          %225 = sbr.rel (%p223) target = $region32
        $region31: #{tpu_custom_call.1} parent=27 // pred_region
          %226 = dma.done %s219, 2048
        $region32: #{tpu_custom_call.1} parent=27 // pred_fallthru
          _
        %s227 = sand.u32 %s77, 1
        %s228 = scalar_lea.sflag [#allocation6], %s227
        %s229 = sand.u32 %s77, 1
        %s230 = smul.addr %s229, 16
        %s231 = scalar_lea.vmem [#allocation5], %s230
        // Predicated region
        $region33: #{tpu_custom_call.1} parent=27 // pred_check
          %p232 = pneg %p90
        $region34: #{tpu_custom_call.1} parent=27 // pred_check_branch
          %234 = sbr.rel (%p232) target = $region36
        $region35: #{tpu_custom_call.1} parent=27 // pred_region
          %235 = dma.done %s228, 256
        $region36: #{tpu_custom_call.1} parent=27 // pred_fallthru
          _
        %s236 = sand.u32 %s49, 1
        %s237 = scalar_lea.sflag [#allocation3], %s236
        %s238 = sand.u32 %s49, 1
        %s239 = smul.addr %s238, 128
        %s240 = scalar_lea.vmem [#allocation2], %s239
        %p241 = pneg %p62
        %p242 = pneg %p59
        %s243 = sand.u32 %s77, 1
        %s244 = scalar_lea.sflag [#allocation6], %s243
        %s245 = sand.u32 %s77, 1
        %s246 = smul.addr %s245, 16
        %s247 = scalar_lea.vmem [#allocation5], %s246
        %p248 = pneg %p90
        %p249 = pneg %p87
        %p250 = pneg %p118
        %p251 = pneg %p115
        %s252 = sand.u32 %s105, 1
        %s253 = scalar_lea.sflag [#allocation4], %s252
        %s254 = sand.u32 %s105, 1
        %s255 = smul.addr %s254, 16
        %s256 = scalar_lea.vmem [#allocation7], %s255
        %p257 = pneg %p146
        %p258 = pneg %p143
        %s259 = sand.u32 %s133, 1
        %s260 = scalar_lea.sflag [#allocation9], %s259
        %s261 = sand.u32 %s133, 1
        %s262 = smul.addr %s261, 16
        %s263 = scalar_lea.vmem [#allocation8], %s262
        %s264 = smul.u32 2, %s32
        %s265 = smul.u32 2, %s32
        %s266 = smul.u32 2, %s32
        %s267 = smul.u32 2, %s32
        %v268 = vld [vmem:[%s222] sm:$0xff]
        %v269 = vld [vmem:[%s222 + $0x8] sm:$0xff]
        %v270 = vld [vmem:[%s222 + $0x10] sm:$0xff]
        %v271 = vld [vmem:[%s222 + $0x18] sm:$0xff]
        %v272 = vld [vmem:[%s222 + $0x20] sm:$0xff]
        %v273 = vld [vmem:[%s222 + $0x28] sm:$0xff]
        %v274 = vld [vmem:[%s222 + $0x30] sm:$0xff]
        %v275 = vld [vmem:[%s222 + $0x38] sm:$0xff]
        %v276 = vld [vmem:[%s222 + $0x40] sm:$0xff]
        %v277 = vld [vmem:[%s222 + $0x48] sm:$0xff]
        %v278 = vld [vmem:[%s222 + $0x50] sm:$0xff]
        %v279 = vld [vmem:[%s222 + $0x58] sm:$0xff]
        %v280 = vld [vmem:[%s222 + $0x60] sm:$0xff]
        %v281 = vld [vmem:[%s222 + $0x68] sm:$0xff]
        %v282 = vld [vmem:[%s222 + $0x70] sm:$0xff]
        %v283 = vld [vmem:[%s222 + $0x78] sm:$0xff]
        %v284 = vld [vmem:[%s231] sm:$0xff]
        %v285 = vld [vmem:[%s231 + $0x8] sm:$0xff]
        %vm286 = vcmp.ne.s32.totalorder %v284, 255
        %vm287 = vcmp.ne.s32.totalorder %v285, 255
        %v288 = vsel %vm286, %v284, 0
        %v289 = vsel %vm287, %v285, 0
        %vm290 = vcmp.eq.s32.totalorder %v288, 0
        %vm291 = vcmp.eq.s32.totalorder %v289, 0
        %vm292 = vcmp.eq.s32.totalorder %v288, 1
        %vm293 = vcmp.eq.s32.totalorder %v289, 1
        %vm294 = vcmp.eq.s32.totalorder %v288, 2
        %vm295 = vcmp.eq.s32.totalorder %v289, 2
        %vm296 = vcmp.eq.s32.totalorder %v288, 3
        %vm297 = vcmp.eq.s32.totalorder %v289, 3
        %vm298 = vcmp.eq.s32.totalorder %v288, 4
        %vm299 = vcmp.eq.s32.totalorder %v289, 4
        %vm300 = vcmp.eq.s32.totalorder %v288, 5
        %vm301 = vcmp.eq.s32.totalorder %v289, 5
        %vm302 = vcmp.eq.s32.totalorder %v288, 6
        %vm303 = vcmp.eq.s32.totalorder %v289, 6
        %vm304 = vcmp.eq.s32.totalorder %v288, 7
        %vm305 = vcmp.eq.s32.totalorder %v289, 7
        %vm306 = vcmask 130048
        %v307 = vsel %vm306, %v268, -inf
        %v308 = vsel %vm306, %v270, -inf
        %v309 = vsel %vm306, %v272, -inf
        %v310 = vmax.f32 %v307, %v309
        %v311 = vsel %vm306, %v274, -inf
        %v312 = vmax.f32 %v308, %v311
        %v313 = vsel %vm306, %v276, -inf
        %v314 = vmax.f32 %v310, %v313
        %v315 = vsel %vm306, %v278, -inf
        %v316 = vmax.f32 %v312, %v315
        %v317 = vsel %vm306, %v280, -inf
        %v318 = vmax.f32 %v314, %v317
        %v319 = vsel %vm306, %v282, -inf
        %v320 = vmax.f32 %v316, %v319
        %v321 = vmax.f32 %v318, %v320
        %v322 = vsel %vm306, %v269, -inf
        %v323 = vsel %vm306, %v271, -inf
        %v324 = vsel %vm306, %v273, -inf
        %v325 = vmax.f32 %v322, %v324
        %v326 = vsel %vm306, %v275, -inf
        %v327 = vmax.f32 %v323, %v326
        %v328 = vsel %vm306, %v277, -inf
        %v329 = vmax.f32 %v325, %v328
        %v330 = vsel %vm306, %v279, -inf
        %v331 = vmax.f32 %v327, %v330
        %v332 = vsel %vm306, %v281, -inf
        %v333 = vmax.f32 %v329, %v332
        %v334 = vsel %vm306, %v283, -inf
        %v335 = vmax.f32 %v331, %v334
        %v336 = vmax.f32 %v333, %v335
        %v337 = vsub.f32 %v268, %v321
        %v338 = vsub.f32 %v269, %v336
        %v339 = vsub.f32 %v270, %v321
        %v340 = vsub.f32 %v271, %v336
        %v341 = vsub.f32 %v272, %v321
        %v342 = vsub.f32 %v273, %v336
        %v343 = vsub.f32 %v274, %v321
        %v344 = vsub.f32 %v275, %v336
        %v345 = vsub.f32 %v276, %v321
        %v346 = vsub.f32 %v277, %v336
        %v347 = vsub.f32 %v278, %v321
        %v348 = vsub.f32 %v279, %v336
        %v349 = vsub.f32 %v280, %v321
        %v350 = vsub.f32 %v281, %v336
        %v351 = vsub.f32 %v282, %v321
        %v352 = vsub.f32 %v283, %v336
        %v353 = vmul.f32 %v337, 1.442695
        %v354 = vpow.pop %v353
        %v355 = vmul.f32 %v338, 1.442695
        %v356 = vpow.pop %v355
        %v357 = vmul.f32 %v339, 1.442695
        %v358 = vpow.pop %v357
        %v359 = vmul.f32 %v340, 1.442695
        %v360 = vpow.pop %v359
        %v361 = vmul.f32 %v341, 1.442695
        %v362 = vpow.pop %v361
        %v363 = vmul.f32 %v342, 1.442695
        %v364 = vpow.pop %v363
        %v365 = vmul.f32 %v343, 1.442695
        %v366 = vpow.pop %v365
        %v367 = vmul.f32 %v344, 1.442695
        %v368 = vpow.pop %v367
        %v369 = vmul.f32 %v345, 1.442695
        %v370 = vpow.pop %v369
        %v371 = vmul.f32 %v346, 1.442695
        %v372 = vpow.pop %v371
        %v373 = vmul.f32 %v347, 1.442695
        %v374 = vpow.pop %v373
        %v375 = vmul.f32 %v348, 1.442695
        %v376 = vpow.pop %v375
        %v377 = vmul.f32 %v349, 1.442695
        %v378 = vpow.pop %v377
        %v379 = vmul.f32 %v350, 1.442695
        %v380 = vpow.pop %v379
        %v381 = vmul.f32 %v351, 1.442695
        %v382 = vpow.pop %v381
        %v383 = vmul.f32 %v352, 1.442695
        %v384 = vpow.pop %v383
        %v385 = vsel %vm306, %v354, 0.0
        %v386 = vsel %vm306, %v358, 0.0
        %v387 = vadd.f32 %v385, %v386
        %v388 = vsel %vm306, %v362, 0.0
        %v389 = vadd.f32 %v387, %v388
        %v390 = vsel %vm306, %v366, 0.0
        %v391 = vadd.f32 %v389, %v390
        %v392 = vsel %vm306, %v370, 0.0
        %v393 = vadd.f32 %v391, %v392
        %v394 = vsel %vm306, %v374, 0.0
        %v395 = vadd.f32 %v393, %v394
        %v396 = vsel %vm306, %v378, 0.0
        %v397 = vadd.f32 %v395, %v396
        %v398 = vsel %vm306, %v382, 0.0
        %v399 = vadd.f32 %v397, %v398
        %v400 = vsel %vm306, %v356, 0.0
        %v401 = vsel %vm306, %v360, 0.0
        %v402 = vadd.f32 %v400, %v401
        %v403 = vsel %vm306, %v364, 0.0
        %v404 = vadd.f32 %v402, %v403
        %v405 = vsel %vm306, %v368, 0.0
        %v406 = vadd.f32 %v404, %v405
        %v407 = vsel %vm306, %v372, 0.0
        %v408 = vadd.f32 %v406, %v407
        %v409 = vsel %vm306, %v376, 0.0
        %v410 = vadd.f32 %v408, %v409
        %v411 = vsel %vm306, %v380, 0.0
        %v412 = vadd.f32 %v410, %v411
        %v413 = vsel %vm306, %v384, 0.0
        %v414 = vadd.f32 %v412, %v413
        %v415 = vlog2.pop %v399
        %v416 = vmul.f32 %v415, 0.6931472
        %v417 = vlog2.pop %v414
        %v418 = vmul.f32 %v417, 0.6931472
        %v419 = vadd.f32 %v321, %v416
        %v420 = vadd.f32 %v336, %v418
        %v421 = vsel %vm290, %v268, 0.0
        %v422 = vsel %vm291, %v269, 0.0
        %v423 = vsel %vm292, %v270, 0.0
        %v424 = vsel %vm293, %v271, 0.0
        %v425 = vsel %vm294, %v272, 0.0
        %v426 = vsel %vm295, %v273, 0.0
        %v427 = vsel %vm296, %v274, 0.0
        %v428 = vsel %vm297, %v275, 0.0
        %v429 = vsel %vm298, %v276, 0.0
        %v430 = vsel %vm299, %v277, 0.0
        %v431 = vsel %vm300, %v278, 0.0
        %v432 = vsel %vm301, %v279, 0.0
        %v433 = vsel %vm302, %v280, 0.0
        %v434 = vsel %vm303, %v281, 0.0
        %v435 = vsel %vm304, %v282, 0.0
        %v436 = vsel %vm305, %v283, 0.0
        %v437 = vsel %vm306, %v421, 0.0
        %v438 = vsel %vm306, %v423, 0.0
        %v439 = vadd.f32 %v437, %v438
        %v440 = vsel %vm306, %v425, 0.0
        %v441 = vadd.f32 %v439, %v440
        %v442 = vsel %vm306, %v427, 0.0
        %v443 = vadd.f32 %v441, %v442
        %v444 = vsel %vm306, %v429, 0.0
        %v445 = vadd.f32 %v443, %v444
        %v446 = vsel %vm306, %v431, 0.0
        %v447 = vadd.f32 %v445, %v446
        %v448 = vsel %vm306, %v433, 0.0
        %v449 = vadd.f32 %v447, %v448
        %v450 = vsel %vm306, %v435, 0.0
        %v451 = vadd.f32 %v449, %v450
        %v452 = vsel %vm306, %v422, 0.0
        %v453 = vsel %vm306, %v424, 0.0
        %v454 = vadd.f32 %v452, %v453
        %v455 = vsel %vm306, %v426, 0.0
        %v456 = vadd.f32 %v454, %v455
        %v457 = vsel %vm306, %v428, 0.0
        %v458 = vadd.f32 %v456, %v457
        %v459 = vsel %vm306, %v430, 0.0
        %v460 = vadd.f32 %v458, %v459
        %v461 = vsel %vm306, %v432, 0.0
        %v462 = vadd.f32 %v460, %v461
        %v463 = vsel %vm306, %v434, 0.0
        %v464 = vadd.f32 %v462, %v463
        %v465 = vsel %vm306, %v436, 0.0
        %v466 = vadd.f32 %v464, %v465
        %v467 = vsub.f32 %v419, %v451
        %v468 = vsub.f32 %v420, %v466
        %v469 = vsub.f32 %v451, %v419
        %v470 = vsub.f32 %v466, %v420
        %v471 = vmul.f32 %v469, 1.442695
        %v472 = vpow.pop %v471
        %v473 = vmul.f32 %v470, 1.442695
        %v474 = vpow.pop %v473
        %v475 = vsel %vm286, %v467, 0.0
        %v476 = vsel %vm287, %v468, 0.0
        %477 = vst.msk [vmem:[%s263] sm:$0xff] %vm306, %v475
        %478 = vst.msk [vmem:[%s263 + $0x8] sm:$0xff] %vm306, %v476
        %v481 = vsel %vm286, %v472, 2139095040
        %v482 = vsel %vm287, %v474, 2139095040
        %483 = vst.msk [vmem:[%s256] sm:$0xff] %vm306, %v481
        %484 = vst.msk [vmem:[%s256 + $0x8] sm:$0xff] %vm306, %v482
        %s485 = sand.u32 %s105, 1
        %s486 = scalar_lea.sflag [#allocation4], %s485
        %s487 = sand.u32 %s105, 1
        %s488 = smul.addr %s487, 16
        %s489 = scalar_lea.vmem [#allocation7], %s488
        %s490 = sand.u32 %s133, 1
        %s491 = scalar_lea.sflag [#allocation9], %s490
        %s492 = sand.u32 %s133, 1
        %s493 = smul.addr %s492, 16
        %s494 = scalar_lea.vmem [#allocation8], %s493
        // Predicated region
        $region37: #{tpu_custom_call.1} parent=27 // pred_check
          %p495 = pneg %p115
        $region38: #{tpu_custom_call.1} parent=27 // pred_check_branch
          %497 = sbr.rel (%p495) target = $region40
        $region39: #{tpu_custom_call.1} parent=27 // pred_region
          %s498 = smul.u32 2, %s32
          %s500 = ssub.s32 256, 256
          %501 = vsyncadd %s486, %s500
          %s502 = smul.addr %s31, 2
          %s503 = sadd.s32 %s498, %s502
          %s504 = smul.addr %s503, 128
          %s505 = scalar_lea.hbm %s2, %s504
          %s506 = sshll.u32 %s489, 4
          %s507 = int_to_ptr.vmem [resolvable:$true] %s506
          %512 = dma.vmem_to_hbm [thread:$0]  %s507, 256, %s505, %s486, 128, 128, 8
        $region40: #{tpu_custom_call.1} parent=27 // pred_fallthru
          _
        // Predicated region
        $region41: #{tpu_custom_call.1} parent=27 // pred_check
          %p513 = pneg %p143
        $region42: #{tpu_custom_call.1} parent=27 // pred_check_branch
          %515 = sbr.rel (%p513) target = $region44
        $region43: #{tpu_custom_call.1} parent=27 // pred_region
          %s516 = smul.u32 2, %s32
          %s518 = ssub.s32 256, 256
          %519 = vsyncadd %s491, %s518
          %s520 = smul.addr %s31, 2
          %s521 = sadd.s32 %s516, %s520
          %s522 = smul.addr %s521, 128
          %s523 = scalar_lea.hbm %s3, %s522
          %s524 = sshll.u32 %s494, 4
          %s525 = int_to_ptr.vmem [resolvable:$true] %s524
          %530 = dma.vmem_to_hbm [thread:$0]  %s525, 256, %s523, %s491, 128, 128, 8
        $region44: #{tpu_custom_call.1} parent=27 // pred_fallthru
          _
      $region28: #{tpu_custom_call.1} parent=5 // pred_fallthru
        _
      %p531 = scmp.le.s32.totalorder 2, %s22
      // Predicated region
      $region45: #{tpu_custom_call.1} parent=5 // pred_check
        %p532 = pneg %p531
      $region46: #{tpu_custom_call.1} parent=5 // pred_check_branch
        %534 = sbr.rel (%p532) target = $region48
      $region47: #{tpu_custom_call.1} parent=5 // pred_region
        %s535 = ssub.s32 %s22, 2
        // Predicated region
        $region49: #{tpu_custom_call.1} parent=47 // pred_check
          %p536 = pneg %p121
        $region50: #{tpu_custom_call.1} parent=47 // pred_check_branch
          %538 = sbr.rel (%p536) target = $region52
        $region51: #{tpu_custom_call.1} parent=47 // pred_region
          %s539 = sand.u32 %s106, 1
          %s540 = scalar_lea.sflag [#allocation4], %s539
          %s541 = sand.u32 %s106, 1
          %s542 = smul.addr %s541, 16
          %s543 = scalar_lea.vmem [#allocation7], %s542
          %544 = dma.done %s540, 256
        $region52: #{tpu_custom_call.1} parent=47 // pred_fallthru
          _
        // Predicated region
        $region53: #{tpu_custom_call.1} parent=47 // pred_check
          %p545 = pneg %p149
        $region54: #{tpu_custom_call.1} parent=47 // pred_check_branch
          %547 = sbr.rel (%p545) target = $region56
        $region55: #{tpu_custom_call.1} parent=47 // pred_region
          %s548 = sand.u32 %s134, 1
          %s549 = scalar_lea.sflag [#allocation9], %s548
          %s550 = sand.u32 %s134, 1
          %s551 = smul.addr %s550, 16
          %s552 = scalar_lea.vmem [#allocation8], %s551
          %553 = dma.done %s549, 256
        $region56: #{tpu_custom_call.1} parent=47 // pred_fallthru
          _
      $region48: #{tpu_custom_call.1} parent=5 // pred_fallthru
        _
    $region6: #{tpu_custom_call.1} parent=1 // loop_footer
      %s26 = sadd.s32 1, %s22
    $region7: #{tpu_custom_call.1} parent=1 // loop_footer_branch
      %21 = sbr.rel target = $region3
    $region8: #{tpu_custom_call.1} parent=1 // loop_exit
      _
    %554 = vsyncpa [#allocation3], 1
    %s555 = scalar_lea.sflag [#allocation3], 1
    %556 = vsyncpa %s555, 1
    %557 = vsyncpa [#allocation6], 1
    %s558 = scalar_lea.sflag [#allocation6], 1
    %559 = vsyncpa %s558, 1
    %560 = vsyncpa [#allocation4], 1
    %s561 = scalar_lea.sflag [#allocation4], 1
    %562 = vsyncpa %s561, 1
    %563 = vsyncpa [#allocation9], 1
    %s564 = scalar_lea.sflag [#allocation9], 1
    %565 = vsyncpa %s564, 1

</llo_original>
